<compile_context>
chip_gen: v6e
topology: v6e:2x2x1
jax: 0.10.0
libtpu: 0.0.40
codegen_flags: <defaults>
</compile_context>

<pallas_src>
import math
import jax
import jax.numpy as jnp
from jax import lax
from jax.experimental import pallas as pl
from jax.experimental.pallas import tpu as pltpu


# ---------------------------------------------------------------------------
# Helpers
# ---------------------------------------------------------------------------

def _softplus(x):
    # Matches torch.nn.functional.softplus (beta=1, threshold=20); f32 math.
    return jnp.where(x > 20.0, x, jnp.log1p(jnp.exp(jnp.minimum(x, 20.0))))


def _pick_tile(dim, target, align):
    """Largest tile <= target that is a multiple of `align` and divides `dim`,
    else the full dim (full-dim blocks are always legal)."""
    if dim <= target:
        return dim
    for t in range(target, align - 1, -align):
        if dim % t == 0:
            return t
    return dim


def _pick_chunk(s, target=256):
    """Sequence chunk: multiple of 16 (bf16 sublane granule) dividing S, or S."""
    if s <= target:
        return s
    for c in range(target, 15, -16):
        if s % c == 0:
            return c
    return s


def _pick_group(bh):
    """Heads per grid step. 8 keeps the (G,1) scale block 8-aligned."""
    return 8 if bh % 8 == 0 else bh


# ---------------------------------------------------------------------------
# Tiled linear projection kernel:  out = x @ W^T + b   (W in PyTorch layout)
# ---------------------------------------------------------------------------

def _linear_kernel(x_ref, w_ref, b_ref, o_ref, acc_ref):
    k = pl.program_id(2)

    @pl.when(k == 0)
    def _():
        acc_ref[...] = jnp.zeros_like(acc_ref)

    # Contract d_in of x (dim 1) with d_in of W (dim 1): no host-side W.T.
    acc_ref[...] += lax.dot_general(
        x_ref[...], w_ref[...],
        dimension_numbers=(((1,), (1,)), ((), ())),
        preferred_element_type=jnp.float32)

    @pl.when(k == pl.num_programs(2) - 1)
    def _():
        o_ref[...] = (acc_ref[...] + b_ref[...]).astype(o_ref.dtype)


def _pallas_linear(x2d, w, b, out_dtype=jnp.float32):
    """x2d: (M, d_in) bf16; w: (d_out, d_in) bf16 (PyTorch layout); b: (d_out,) f32."""
    m, d_in = x2d.shape
    d_out = w.shape[0]
    tm = _pick_tile(m, 256, 16)
    tn = _pick_tile(d_out, 256, 128)
    tk = _pick_tile(d_in, 512, 128)
    grid = (m // tm, d_out // tn, d_in // tk)
    return pl.pallas_call(
        _linear_kernel,
        out_shape=jax.ShapeDtypeStruct((m, d_out), out_dtype),
        grid=grid,
        in_specs=[
            pl.BlockSpec((tm, tk), lambda i, j, k: (i, k)),
            pl.BlockSpec((tn, tk), lambda i, j, k: (j, k)),
            pl.BlockSpec((1, tn), lambda i, j, k: (0, j)),
        ],
        out_specs=pl.BlockSpec((tm, tn), lambda i, j, k: (i, j)),
        scratch_shapes=[pltpu.VMEM((tm, tn), jnp.float32)],
        compiler_params=pltpu.CompilerParams(
            dimension_semantics=("parallel", "parallel", "arbitrary")),
    )(x2d, w, b.reshape(1, d_out))


# ---------------------------------------------------------------------------
# Attention kernels
# ---------------------------------------------------------------------------

def _attn_causal_kernel(scale_ref, q_ref, k_ref, v_ref, o_ref, kv_ref, kn_ref):
    """Chunked linear-attention recurrence over the sequence (grid axis 1).

    Carries per-head state across chunks:
      kv_ref: (G, D, D)  = sum_{t < chunk_start} k_t v_t^T   (f32)
      kn_ref: (G, 1, D)  = sum_{t < chunk_start} k_t         (f32)
    """
    c_idx = pl.program_id(1)

    @pl.when(c_idx == 0)
    def _():
        kv_ref[...] = jnp.zeros_like(kv_ref)
        kn_ref[...] = jnp.zeros_like(kn_ref)

    scale = scale_ref[...][:, :, None]                         # (G,1,1) f32
    q = _softplus(q_ref[...].astype(jnp.float32) * scale)      # (G,C,D) f32
    k = _softplus(k_ref[...].astype(jnp.float32) * scale)      # (G,C,D) f32
    v = v_ref[...].astype(jnp.bfloat16)                        # (G,C,D) bf16

    q_b = q.astype(jnp.bfloat16)
    k_b = k.astype(jnp.bfloat16)
    ck = q.shape[1]

    # Intra-chunk causal part: only this (C,C) diagonal block is ever masked.
    s = jnp.einsum("gcd,ged->gce", q_b, k_b,
                   preferred_element_type=jnp.float32)         # (G,C,C)
    row = lax.broadcasted_iota(jnp.int32, (1, ck, ck), 1)
    col = lax.broadcasted_iota(jnp.int32, (1, ck, ck), 2)
    s = jnp.where(row >= col, s, 0.0)

    num = jnp.einsum("gce,ged->gcd", s.astype(jnp.bfloat16), v,
                     preferred_element_type=jnp.float32)       # (G,C,D)
    den = jnp.sum(s, axis=-1, keepdims=True)                   # (G,C,1)

    # Inter-chunk part from the carried state (no mask, no score matrix).
    num += jnp.einsum("gcd,gde->gce", q_b, kv_ref[...].astype(jnp.bfloat16),
                      preferred_element_type=jnp.float32)
    den += jnp.sum(q * kn_ref[...], axis=-1, keepdims=True)

    # Update state with this chunk (f32 accumulation).
    kv_ref[...] += jnp.einsum("gcd,gce->gde", k_b, v,
                              preferred_element_type=jnp.float32)
    kn_ref[...] += jnp.sum(k, axis=1, keepdims=True)

    o_ref[...] = (num * pl.reciprocal(den, approx=False)).astype(o_ref.dtype)


def _attn_noncausal_kernel(scale_ref, q_ref, k_ref, v_ref, o_ref):
    """Non-causal path: global (D,D) KV and (1,D) K-sum, no score matrix."""
    scale = scale_ref[...][:, :, None]
    q = _softplus(q_ref[...].astype(jnp.float32) * scale)
    k = _softplus(k_ref[...].astype(jnp.float32) * scale)
    v = v_ref[...].astype(jnp.bfloat16)
    q_b = q.astype(jnp.bfloat16)
    k_b = k.astype(jnp.bfloat16)

    kv = jnp.einsum("gsD,gsd->gDd", k_b, v,
                    preferred_element_type=jnp.float32)        # (G,D,D)
    kn = jnp.sum(k, axis=1, keepdims=True)                     # (G,1,D)
    num = jnp.einsum("gsD,gDd->gsd", q_b, kv.astype(jnp.bfloat16),
                     preferred_element_type=jnp.float32)
    den = jnp.sum(q * kn, axis=-1, keepdims=True)
    o_ref[...] = (num * pl.reciprocal(den, approx=False)).astype(o_ref.dtype)


def _pallas_linear_attention(q, k, v, scale, causal=True):
    """q, k, v: (B*H, S, D) bf16 (post-projection); scale: (B*H, 1) f32."""
    bh, s, d = q.shape
    g = _pick_group(bh)

    if causal:
        c = _pick_chunk(s)
        grid = (bh // g, s // c)
        kernel = _attn_causal_kernel
        in_specs = [
            pl.BlockSpec((g, 1), lambda z, i: (z, 0)),
            pl.BlockSpec((g, c, d), lambda z, i: (z, i, 0)),
            pl.BlockSpec((g, c, d), lambda z, i: (z, i, 0)),
            pl.BlockSpec((g, c, d), lambda z, i: (z, i, 0)),
        ]
        out_specs = pl.BlockSpec((g, c, d), lambda z, i: (z, i, 0))
        scratch = [pltpu.VMEM((g, d, d), jnp.float32),
                   pltpu.VMEM((g, 1, d), jnp.float32)]
        dims = ("parallel", "arbitrary")
        flops = bh * (4 * s * c * d + 4 * s * d * d)
    else:
        grid = (bh // g,)
        kernel = _attn_noncausal_kernel
        in_specs = [
            pl.BlockSpec((g, 1), lambda z: (z, 0)),
            pl.BlockSpec((g, s, d), lambda z: (z, 0, 0)),
            pl.BlockSpec((g, s, d), lambda z: (z, 0, 0)),
            pl.BlockSpec((g, s, d), lambda z: (z, 0, 0)),
        ]
        out_specs = pl.BlockSpec((g, s, d), lambda z: (z, 0, 0))
        scratch = []
        dims = ("parallel",)
        flops = bh * 4 * s * d * d

    cost = pl.CostEstimate(
        flops=int(flops),
        transcendentals=int(4 * bh * s * d),
        bytes_accessed=int(4 * bh * s * d * 2 + bh * 4),
    )
    return pl.pallas_call(
        kernel,
        out_shape=jax.ShapeDtypeStruct((bh, s, d), jnp.bfloat16),
        grid=grid,
        in_specs=in_specs,
        out_specs=out_specs,
        scratch_shapes=scratch,
        compiler_params=pltpu.CompilerParams(dimension_semantics=dims),
        cost_estimate=cost,
    )(scale, q, k, v)


# ---------------------------------------------------------------------------
# Forward pass (glue in plain JAX, hot paths in Pallas)
# ---------------------------------------------------------------------------

def linear_attention_forward(x, params, n_heads, causal=True, batch_first=False):
    # TODO(synk): rope rotation (external RotaryEmbedding) and attn_sink are not
    # implemented; this reproduces the rope=None, attn_sink=False path.
    if batch_first:
        x = jnp.swapaxes(x, 0, 1)
    s_len, bsz, d_model = x.shape
    d_head = d_model // n_heads

    # Fused QKV projection: one tiled Pallas matmul, x read from HBM once.
    w_qkv = jnp.concatenate([params["wq"], params["wk"], params["wv"]], axis=0)
    b_qkv = jnp.concatenate([params["bq"], params["bk"], params["bv"]], axis=0)
    x2d = x.reshape(s_len * bsz, d_model).astype(jnp.bfloat16)
    qkv = _pallas_linear(x2d, w_qkv.astype(jnp.bfloat16), b_qkv,
                         out_dtype=jnp.bfloat16)                 # (S*B, 3E)

    q2d = qkv[:, :d_model]
    k2d = qkv[:, d_model:2 * d_model]
    v2d = qkv[:, 2 * d_model:]

    # rearrange 's b (h d) -> (b h) s d'
    def to_bh_s_d(t):
        t = t.reshape(s_len, bsz, n_heads, d_head)
        t = jnp.transpose(t, (1, 2, 0, 3))
        return t.reshape(bsz * n_heads, s_len, d_head)

    q, k, v = to_bh_s_d(q2d), to_bh_s_d(k2d), to_bh_s_d(v2d)

    # q,k /= sqrt(d_head) * exp(beta_h)  ->  per-(batch,head) scale, b-major.
    scale_h = 1.0 / (math.sqrt(d_head) * jnp.exp(params["beta"]))   # (H,)
    scale = jnp.tile(scale_h, (bsz,)).reshape(bsz * n_heads, 1).astype(jnp.float32)

    attn = _pallas_linear_attention(q, k, v, scale, causal=causal)  # (BH,S,D) bf16

    # rearrange '(b h) s d -> b s (h d)'
    attn = attn.reshape(bsz, n_heads, s_len, d_head)
    attn = jnp.transpose(attn, (0, 2, 1, 3)).reshape(bsz * s_len, d_model)

    out2d = _pallas_linear(attn, params["wo"].astype(jnp.bfloat16),
                           params["bo"], out_dtype=jnp.float32)
    out = out2d.reshape(bsz, s_len, d_model)
    if batch_first:
        out = jnp.swapaxes(out, 0, 1)
    return out


# ---------------------------------------------------------------------------
# Pure-JAX f32 reference (mirrors the PyTorch cumsum formulation)
# ---------------------------------------------------------------------------

def reference_forward(x, params, n_heads, causal=True):
    s_len, bsz, d_model = x.shape
    d_head = d_model // n_heads

    def lin(t, w, b):
        return jnp.einsum("sbe,oe->sbo", t, w, precision="highest") + b

    q = lin(x, params["wq"], params["bq"])
    k = lin(x, params["wk"], params["bk"])
    v = lin(x, params["wv"], params["bv"])

    def to_bh_s_d(t):
        t = t.reshape(s_len, bsz, n_heads, d_head)
        return jnp.transpose(t, (1, 2, 0, 3)).reshape(bsz * n_heads, s_len, d_head)

    q, k, v = to_bh_s_d(q), to_bh_s_d(k), to_bh_s_d(v)
    beta = jnp.exp(params["beta"]).reshape(1, n_heads, 1, 1)
    scale = (1.0 / (math.sqrt(d_head) * beta)).reshape(1, n_heads, 1, 1)
    scale = jnp.tile(scale, (bsz, 1, 1, 1)).reshape(bsz * n_heads, 1, 1)
    q = _softplus(q * scale)
    k = _softplus(k * scale)

    if causal:
        kv = jnp.cumsum(k[..., :, None] * v[..., None, :], axis=1)   # (bh,s,D,d)
        kn = jnp.cumsum(k, axis=1)                                   # (bh,s,D)
    else:
        kv = jnp.einsum("zsD,zsd->zDd", k, v, precision="highest")[:, None]
        kn = jnp.sum(k, axis=1, keepdims=True)
    num = jnp.einsum("zsD,zsDd->zsd", q, kv, precision="highest")
    den = jnp.einsum("zsD,zsD->zs", q, kn, precision="highest")[..., None]
    out = num / den

    out = out.reshape(bsz, n_heads, s_len, d_head)
    out = jnp.transpose(out, (0, 2, 1, 3)).reshape(bsz, s_len, d_model)
    out = jnp.einsum("bse,oe->bso", out, params["wo"], precision="highest") + params["bo"]
    return out


# ---------------------------------------------------------------------------
# Deterministic parameter init (matches module: xavier_uniform / zeros)
# ---------------------------------------------------------------------------

def init_params(key, d_model, n_heads):
    bound = math.sqrt(6.0 / (d_model + d_model))
    ks = jax.random.split(key, 4)

    def xavier(k):
        return jax.random.uniform(k, (d_model, d_model), jnp.float32, -bound, bound)

    return {
        "wq": xavier(ks[0]), "bq": jnp.zeros((d_model,), jnp.float32),
        "wk": xavier(ks[1]), "bk": jnp.zeros((d_model,), jnp.float32),
        "wv": xavier(ks[2]), "bv": jnp.zeros((d_model,), jnp.float32),
        "wo": xavier(ks[3]), "bo": jnp.zeros((d_model,), jnp.float32),
        "beta": jnp.zeros((n_heads,), jnp.float32),
    }


if __name__ == "__main__":
    d_model, n_heads = 32, 4
    seq, bsz = 8, 2

    root = jax.random.PRNGKey(0)
    k_x, k_p = jax.random.split(root)
    x = jax.random.normal(k_x, (seq, bsz, d_model), dtype=jnp.float32)
    params = init_params(k_p, d_model, n_heads)

    out = linear_attention_forward(x, params, n_heads, causal=True, batch_first=False)
    out = jax.block_until_ready(out)

    ref = reference_forward(x, params, n_heads, causal=True)
    assert out.shape == (bsz, seq, d_model), out.shape
    # bf16 matmul operands (f32 accumulation) -> tolerance loosened accordingly.
    max_err = float(jnp.max(jnp.abs(out - ref)))
    assert jnp.allclose(out, ref, rtol=2e-2, atol=2e-2), max_err

    # Also exercise the non-causal Pallas path.
    out_nc = jax.block_until_ready(
        linear_attention_forward(x, params, n_heads, causal=False, batch_first=False))
    ref_nc = reference_forward(x, params, n_heads, causal=False)
    max_err_nc = float(jnp.max(jnp.abs(out_nc - ref_nc)))
    assert jnp.allclose(out_nc, ref_nc, rtol=2e-2, atol=2e-2), max_err_nc

    print("KERNEL_OK")
</pallas_src>

<mosaic_0001>
module attributes {stable_mosaic.version = 11 : i64} {
  func.func @_linear_kernel(%arg0: i32, %arg1: i32, %arg2: i32, %arg3: memref<16x32xbf16, #tpu.memory_space<vmem>>, %arg4: memref<96x32xbf16, #tpu.memory_space<vmem>>, %arg5: memref<1x96xf32, #tpu.memory_space<vmem>>, %arg6: memref<16x96xbf16, #tpu.memory_space<vmem>>, %arg7: memref<16x96xf32, #tpu.memory_space<vmem>>) attributes {dimension_semantics = [#tpu.dimension_semantics<parallel>, #tpu.dimension_semantics<parallel>, #tpu.dimension_semantics<arbitrary>], iteration_bounds = array<i64: 1, 1, 1>, scalar_prefetch = 0 : i64, scratch_operands = 1 : i64, tpu.core_type = #tpu.core_type<tc>, window_params = [{transform_indices = @transform_0, window_bounds = array<i64: 16, 32>}, {transform_indices = @transform_1, window_bounds = array<i64: 96, 32>}, {transform_indices = @transform_2, window_bounds = array<i64: 1, 96>}, {transform_indices = @transform_3, window_bounds = array<i64: 16, 96>}]} {
    %c0_i32 = arith.constant 0 : i32
    %0 = arith.cmpi eq, %arg2, %c0_i32 : i32
    %1 = arith.extui %0 : i1 to i32
    %c0_i32_0 = arith.constant 0 : i32
    %2 = arith.cmpi ne, %1, %c0_i32_0 : i32
    scf.if %2 {
      %cst_10 = arith.constant 0.000000e+00 : f32
      %12 = vector.broadcast %cst_10 : f32 to vector<16x96xf32>
      %c0_11 = arith.constant 0 : index
      %c0_12 = arith.constant 0 : index
      %13 = vector.load %arg7[%c0_11, %c0_12] : memref<16x96xf32, #tpu.memory_space<vmem>>, vector<16x96xf32>
      tpu.vector_store %arg7[%c0_11, %c0_12], %12 {strides = array<i32>} : memref<16x96xf32, #tpu.memory_space<vmem>>, vector<16x96xf32>,
    } else {
    }
    %c0 = arith.constant 0 : index
    %c0_1 = arith.constant 0 : index
    %3 = vector.load %arg7[%c0, %c0_1] : memref<16x96xf32, #tpu.memory_space<vmem>>, vector<16x96xf32>
    %c0_2 = arith.constant 0 : index
    %c0_3 = arith.constant 0 : index
    %4 = vector.load %arg3[%c0_2, %c0_3] : memref<16x32xbf16, #tpu.memory_space<vmem>>, vector<16x32xbf16>
    %c0_4 = arith.constant 0 : index
    %c0_5 = arith.constant 0 : index
    %5 = vector.load %arg4[%c0_4, %c0_5] : memref<96x32xbf16, #tpu.memory_space<vmem>>, vector<96x32xbf16>
    %cst = arith.constant dense<0.000000e+00> : vector<16x96xf32>
    %6 = tpu.matmul %4, %5, %cst {dimension_numbers = #tpu.dot_dimension_numbers<[1], [1], [0], [0], [0, 0, 1, 0], [], []>} : vector<16x32xbf16>, vector<96x32xbf16>, vector<16x96xf32> -> vector<16x96xf32>
    %7 = arith.addf %3, %6 : vector<16x96xf32>
    %c0_6 = arith.constant 0 : index
    %c0_7 = arith.constant 0 : index
    %8 = vector.load %arg7[%c0_6, %c0_7] : memref<16x96xf32, #tpu.memory_space<vmem>>, vector<16x96xf32>
    tpu.vector_store %arg7[%c0_6, %c0_7], %7 {strides = array<i32>} : memref<16x96xf32, #tpu.memory_space<vmem>>, vector<16x96xf32>,
    %c0_i32_8 = arith.constant 0 : i32
    %9 = arith.cmpi eq, %arg2, %c0_i32_8 : i32
    %10 = arith.extui %9 : i1 to i32
    %c0_i32_9 = arith.constant 0 : i32
    %11 = arith.cmpi ne, %10, %c0_i32_9 : i32
    scf.if %11 {
      %c0_10 = arith.constant 0 : index
      %c0_11 = arith.constant 0 : index
      %12 = vector.load %arg7[%c0_10, %c0_11] : memref<16x96xf32, #tpu.memory_space<vmem>>, vector<16x96xf32>
      %c0_12 = arith.constant 0 : index
      %c0_13 = arith.constant 0 : index
      %13 = vector.load %arg5[%c0_12, %c0_13] : memref<1x96xf32, #tpu.memory_space<vmem>>, vector<1x96xf32>
      %14 = vector.broadcast %13 : vector<1x96xf32> to vector<16x96xf32>
      %15 = arith.addf %12, %14 : vector<16x96xf32>
      %16 = arith.truncf %15 : vector<16x96xf32> to vector<16x96xbf16>
      %c0_14 = arith.constant 0 : index
      %c0_15 = arith.constant 0 : index
      %17 = vector.load %arg6[%c0_14, %c0_15] : memref<16x96xbf16, #tpu.memory_space<vmem>>, vector<16x96xbf16>
      tpu.vector_store %arg6[%c0_14, %c0_15], %16 {strides = array<i32>} : memref<16x96xbf16, #tpu.memory_space<vmem>>, vector<16x96xbf16>,
    } else {
    }
    return
  }
  func.func @transform_0(%arg0: i32, %arg1: i32, %arg2: i32) -> (i32, i32) {
    %c0_i32 = arith.constant 0 : i32
    return %arg0, %arg2 : i32, i32
  }
  func.func @transform_1(%arg0: i32, %arg1: i32, %arg2: i32) -> (i32, i32) {
    %c0_i32 = arith.constant 0 : i32
    return %arg1, %arg2 : i32, i32
  }
  func.func @transform_2(%arg0: i32, %arg1: i32, %arg2: i32) -> (i32, i32) {
    %c0_i32 = arith.constant 0 : i32
    %c0_i32_0 = arith.constant 0 : i32
    return %c0_i32, %arg1 : i32, i32
  }
  func.func @transform_3(%arg0: i32, %arg1: i32, %arg2: i32) -> (i32, i32) {
    %c0_i32 = arith.constant 0 : i32
    return %arg0, %arg1 : i32, i32
  }
}

</mosaic_0001>

<llo_original>
// kernel: tpu_custom_call.1
$region0: #{tpu_custom_call.1}
  #allocation0 [shape = 'u32[]', space=smem, size = 0x4, offset = 0x4, fixed_abs, tag = 'smem constant byte address 0x4 - core index']
  #allocation1 [shape = 'u32[144,128]{1,0:T(1,128)}', space=vmem, size = 0x12000, scoped, tag = 'internal scratch']
  #allocation2 [shape = 'f32[16,96]{1,0:T(8,128)}', space=vmem, size = 0x2000, scoped, tag = 'scratch operand']
  %s0 = inlined_call_operand.vmem [shape: bf16[16,32], index: 0, kind: input, shape index: {}]
  %s1 = inlined_call_operand.vmem [shape: bf16[96,32], index: 1, kind: input, shape index: {}]
  %s2 = inlined_call_operand.vmem [shape: f32[1,96], index: 2, kind: input, shape index: {}]
  %s3 = inlined_call_operand.hbm [shape: bf16[16,96], index: 3, kind: output, shape index: {}]
  %s4 = sld [smem:[#allocation0]]
  $region30: #{tpu_custom_call.1} parent=0
    _
  %s6 = ssub.s32 1, %s4
  %s7 = scalar_select 0, %s6, %s4
  $region1: #{tpu_custom_call.1} parent=0
    #allocation3 [shape = 'u8[4096]{0}', space=vmem, size = 0x1000, scoped, tag = 'output window, operand 0, single buffered']
    #allocation4 [shape = 's32[1]{0}', space=sflag, size = 0x4, scoped, tag = 'scoped memory for tpu_custom_call.1']
    %8 = vsyncpa [#allocation4], 0
    // Predicated region
    $region2: #{tpu_custom_call.1} parent=1 // pred_check
      _
    $region3: #{tpu_custom_call.1} parent=1 // pred_check_branch
      %10 = sbr.rel (0) target = $region5
    $region4: #{tpu_custom_call.1} parent=1 // pred_region
      _
    $region5: #{tpu_custom_call.1} parent=1 // pred_fallthru
      _
    // Predicated region
    $region6: #{tpu_custom_call.1} parent=1 // pred_check
      _
    $region7: #{tpu_custom_call.1} parent=1 // pred_check_branch
      %12 = sbr.rel (0) target = $region9
    $region8: #{tpu_custom_call.1} parent=1 // pred_region
      _
    $region9: #{tpu_custom_call.1} parent=1 // pred_fallthru
      _
    // Predicated region
    $region10: #{tpu_custom_call.1} parent=1 // pred_check
      _
    $region11: #{tpu_custom_call.1} parent=1 // pred_check_branch
      %14 = sbr.rel (0) target = $region13
    $region12: #{tpu_custom_call.1} parent=1 // pred_region
      _
    $region13: #{tpu_custom_call.1} parent=1 // pred_fallthru
      _
    %p16 = scmp.eq.s32.totalorder 0, 0
    // Predicated region
    $region14: #{tpu_custom_call.1} parent=1 // pred_check
      %p17 = pneg %p16
    $region15: #{tpu_custom_call.1} parent=1 // pred_check_branch
      %19 = sbr.rel (%p17) target = $region17
    $region16: #{tpu_custom_call.1} parent=1 // pred_region
      %vm20 = vcmask 785408
      %21 = vst.msk [vmem:[#allocation2] sm:$0xff] %vm20, 0.0
      %22 = vst.msk [vmem:[#allocation2 + $0x8] sm:$0xff] %vm20, 0.0
    $region17: #{tpu_custom_call.1} parent=1 // pred_fallthru
      _
    %v23 = vld [vmem:[#allocation2] sm:$0xff]
    %v24 = vld [vmem:[#allocation2 + $0x8] sm:$0xff]
    %v25 = vld [vmem:[%s0] sm:$0xf]
    %v26 = vld [vmem:[%s0 + $0x4] sm:$0xf]
    %v27 = vld [vmem:[%s1] sm:$0xf]
    %v28 = vld [vmem:[%s1 + $0x4] sm:$0xf]
    %v29 = vld [vmem:[%s1 + $0x8] sm:$0xf]
    %v30 = vld [vmem:[%s1 + $0xc] sm:$0xf]
    %v31 = vld [vmem:[%s1 + $0x10] sm:$0xf]
    %v32 = vld [vmem:[%s1 + $0x14] sm:$0xf]
    %v33 = vld [vmem:[%s1 + $0x18] sm:$0xf]
    %v34 = vld [vmem:[%s1 + $0x1c] sm:$0xf]
    %v35 = vld [vmem:[%s1 + $0x20] sm:$0xf]
    %v36 = vld [vmem:[%s1 + $0x24] sm:$0xf]
    %v37 = vld [vmem:[%s1 + $0x28] sm:$0xf]
    %v38 = vld [vmem:[%s1 + $0x2c] sm:$0xf]
    %v41 = vunpack.c.l.b16 %v25
    %v42 = vunpack.c.l.b16 %v26
    %v43 = vpack.c.b16 %v42, %v41
    %v56 = vunpack.c.l.b16 %v27
    %v57 = vunpack.c.l.b16 %v28
    %v58 = vunpack.c.l.b16 %v29
    %v59 = vunpack.c.l.b16 %v30
    %v60 = vunpack.c.l.b16 %v31
    %v61 = vunpack.c.l.b16 %v32
    %v62 = vunpack.c.l.b16 %v33
    %v63 = vunpack.c.l.b16 %v34
    %v64 = vunpack.c.l.b16 %v35
    %v65 = vunpack.c.l.b16 %v36
    %v66 = vunpack.c.l.b16 %v37
    %v67 = vunpack.c.l.b16 %v38
    %v68 = vpack.c.b16 %v57, %v56
    %v69 = vpack.c.b16 %v59, %v58
    %v70 = vpack.c.b16 %v61, %v60
    %v71 = vpack.c.b16 %v63, %v62
    %v72 = vpack.c.b16 %v65, %v64
    %v73 = vpack.c.b16 %v67, %v66
    %vm74 = vcmask 261120
    %v76 = vsel %vm74, %v43, 0
    %v79 = vsel %vm74, %v68, 0
    %v82 = vsel %vm74, %v69, 0
    %v85 = vsel %vm74, %v70, 0
    %v88 = vsel %vm74, %v71, 0
    %v91 = vsel %vm74, %v72, 0
    %v94 = vsel %vm74, %v73, 0
    %96 = vmatprep.subr.bf16.mxu0 0
    %97 = vmatpush1.bf16.xpose.msra.mxu0 0
    %98 = vmatprep.subr.bf16.mxu0 0
    %99 = vmatpush1.bf16.xpose.msra.mxu0 0
    %100 = vmatprep.subr.bf16.mxu0 0
    %101 = vmatpush1.bf16.xpose.msra.mxu0 %v94
    %102 = vmatprep.subr.bf16.mxu0 0
    %103 = vmatpush1.bf16.xpose.msra.mxu0 %v91
    %104 = vmatprep.subr.bf16.mxu0 0
    %105 = vmatpush1.bf16.xpose.msra.mxu0 %v88
    %106 = vmatprep.subr.bf16.mxu0 0
    %107 = vmatpush1.bf16.xpose.msra.mxu0 %v85
    %108 = vmatprep.subr.bf16.mxu0 0
    %109 = vmatpush1.bf16.xpose.msra.mxu0 %v82
    %110 = vmatprep.subr.bf16.mxu0 0
    %111 = vmatpush1.bf16.xpose.msra.mxu0 %v79
    %112 = vmatprep.subr.bf16.mxu0 0
    %113 = vmatpush2.bf16.xpose.msra.mxu0 0
    %114 = vmatprep.subr.bf16.mxu0 0
    %115 = vmatpush2.bf16.xpose.msra.mxu0 0
    %116 = vmatprep.subr.bf16.mxu0 0
    %117 = vmatpush2.bf16.xpose.msra.mxu0 0
    %118 = vmatprep.subr.bf16.mxu0 0
    %119 = vmatpush2.bf16.xpose.msra.mxu0 0
    %120 = vmatprep.subr.bf16.mxu0 0
    %121 = vmatpush2.bf16.xpose.msra.mxu0 0
    %122 = vmatprep.subr.bf16.mxu0 0
    %123 = vmatpush2.bf16.xpose.msra.mxu0 0
    %124 = vmatprep.subr.bf16.mxu0 0
    %125 = vmatpush2.bf16.xpose.msra.mxu0 0
    %126 = vmatprep.subr.bf16.mxu0 0
    %127 = vmatpush2.bf16.xpose.msra.mxu0 0
    %128 = vmatprep.mubr.bf16.mxu0 0
    %129 = vmatmul.mubr.bf16.gmra.mxu0 %v76
    %v130 = vpop.f32.mrf.mxu0
    %v131 = vadd.f32 0.0, %v130
    %v132 = vpop.f32.mrf.mxu0
    %v133 = vpop.f32.mrf.mxu0
    %v134 = vadd.f32 0.0, %v133
    %v135 = vpop.f32.mrf.mxu0
    %136 = vdwg.mxu0
    %v137 = vadd.f32 %v23, %v131
    %v138 = vadd.f32 %v24, %v134
    %vm139 = vcmask 785408
    %140 = vst.msk [vmem:[#allocation2] sm:$0xff] %vm139, %v137
    %141 = vst.msk [vmem:[#allocation2 + $0x8] sm:$0xff] %vm139, %v138
    // Predicated region
    $region18: #{tpu_custom_call.1} parent=1 // pred_check
      %p142 = pneg %p16
    $region19: #{tpu_custom_call.1} parent=1 // pred_check_branch
      %144 = sbr.rel (%p142) target = $region21
    $region20: #{tpu_custom_call.1} parent=1 // pred_region
      %v145 = vld [vmem:[#allocation2] sm:$0xff]
      %v146 = vld [vmem:[#allocation2 + $0x8] sm:$0xff]
      %v147 = vld [vmem:[%s2] sm:$0x1]
      %v149 = vlaneseq
      %v150 = vshrl.u32 %v149, 7
      %v151 = vsub.s32 0, %v150
      %v152 = vrot.slane %v147, %v151
      %v154 = vadd.f32 %v145, %v152
      %v155 = vadd.f32 %v146, %v152
      %v156 = vpack.c.bf16 %v155, %v154
      %v158 = vunpack.c.l.b16 %v156
      %v159 = vunpack.c.h.b16 %v156
      %v160 = vpack.c.b16 %v158, %v158
      %v161 = vpack.c.b16 %v159, %v159
      %vm164 = vcmask 781312
      %165 = vst.msk [vmem:[#allocation3] sm:$0xf] %vm164, %v160
      %166 = vst.msk [vmem:[#allocation3 + $0x4] sm:$0xf] %vm164, %v161
    $region21: #{tpu_custom_call.1} parent=1 // pred_fallthru
      _
    // Predicated region
    $region22: #{tpu_custom_call.1} parent=1 // pred_check
      _
    $region23: #{tpu_custom_call.1} parent=1 // pred_check_branch
      %168 = sbr.rel (0) target = $region25
    $region24: #{tpu_custom_call.1} parent=1 // pred_region
      %s170 = ssub.s32 128, 128
      %171 = vsyncadd [#allocation4], %s170
      %s172 = sshll.u32 [#allocation3], 4
      %s173 = int_to_ptr.vmem [resolvable:$true] %s172
      %178 = dma.vmem_to_hbm [thread:$0]  %s173, 128, %s3, [#allocation4], 64, 64, 4
    $region25: #{tpu_custom_call.1} parent=1 // pred_fallthru
      _
    // Predicated region
    $region26: #{tpu_custom_call.1} parent=1 // pred_check
      _
    $region27: #{tpu_custom_call.1} parent=1 // pred_check_branch
      %180 = sbr.rel (0) target = $region29
    $region28: #{tpu_custom_call.1} parent=1 // pred_region
      %181 = dma.done [#allocation4], 128
    $region29: #{tpu_custom_call.1} parent=1 // pred_fallthru
      _
    %182 = vsyncpa [#allocation4], 1

</llo_original>
